<compile_context>
chip_gen: v5e
topology: v5e:2x2
jax: 0.10.0
libtpu: 0.0.40
codegen_flags: <defaults>
</compile_context>

<pallas_src>
import jax
import jax.numpy as jnp
from jax.experimental import pallas as pl
from jax.experimental.pallas import tpu as pltpu


N_TRACK = 10
N_WAYPOINTS = 3
HALF_DIM = 2 * N_TRACK        # 20 features per side after flatten
IN_DIM = 2 * HALF_DIM         # 40
H1 = 128
H2 = 64
OUT_DIM = N_WAYPOINTS * 2     # 6

DEFAULT_TILE_B = 4096         # rows per grid step (multiple of 8)
MIN_GRID_STEPS = 2            # guarantee >=2 steps so v7x megacore engages


def _round_up(x, m):
    return ((x + m - 1) // m) * m


def _mlp_kernel(xl_ref, xr_ref, w1_ref, b1_ref, w2_ref, b2_ref,
                w3_ref, b3_ref, o_ref):
    # One grid step = tile_b rows of the batch.  All three layers fused.
    # Inputs arrive f32; cast to the MXU operand dtype happens here (cheap VPU
    # pack), MXU accumulates in f32, and all bias-add / ReLU / store stay f32.
    x = jnp.concatenate([xl_ref[...], xr_ref[...]], axis=-1)   # (tile_b, 40)
    x = x.astype(w1_ref.dtype)

    h1 = jnp.dot(x, w1_ref[...], preferred_element_type=jnp.float32) + b1_ref[...]
    h1 = jnp.maximum(h1, 0.0)

    h2 = jnp.dot(h1.astype(w2_ref.dtype), w2_ref[...],
                 preferred_element_type=jnp.float32) + b2_ref[...]
    h2 = jnp.maximum(h2, 0.0)

    out = jnp.dot(h2.astype(w3_ref.dtype), w3_ref[...],
                  preferred_element_type=jnp.float32) + b3_ref[...]
    o_ref[...] = out.astype(o_ref.dtype)


def mlp_planner_forward(track_left, track_right, params, *,
                        tile_b=DEFAULT_TILE_B, dot_dtype=jnp.bfloat16):
    """track_left/track_right: (b, n_track, 2) float32 -> (b, n_waypoints, 2).

    dot_dtype: dtype of the MXU operands (default bfloat16).  Accumulation and
    all elementwise math stay float32; with bf16 both the inputs and the
    hidden activations are rounded to bf16 before each matmul.
    """
    b = track_left.shape[0]

    # Free trailing-dim flattens; no concatenate / extra HBM round trip.
    xl = track_left.reshape(b, HALF_DIM)
    xr = track_right.reshape(b, HALF_DIM)

    w1, b1, w2, b2, w3, b3 = params
    # Only the tiny weights are cast in the wrapper; activations stay f32 into
    # the kernel and are cast on-chip (avoids an extra XLA pass over the
    # dominant input stream).
    w1c = w1.astype(dot_dtype)
    w2c = w2.astype(dot_dtype)
    w3c = w3.astype(dot_dtype)

    # Keep the batch sublane-aligned (multiple of 8) with a tiny (<=7 row) pad
    # only when needed; typical batch sizes take the no-pad path.
    b_eff = _round_up(b, 8)
    if b_eff != b:
        pad = ((0, b_eff - b), (0, 0))
        xl = jnp.pad(xl, pad)
        xr = jnp.pad(xr, pad)

    # Tile the batch.  Cap the tile so the grid has >= MIN_GRID_STEPS steps
    # whenever the batch allows (v7x megacore); ragged last tiles are masked
    # by Pallas and the extra rows are sliced off below.
    cap = max(8, _round_up(pl.cdiv(b_eff, MIN_GRID_STEPS), 8))
    tile_b = max(8, min(_round_up(int(tile_b), 8), cap))
    grid = (pl.cdiv(b_eff, tile_b),)

    x_spec = pl.BlockSpec((tile_b, HALF_DIM), lambda i: (i, 0))
    out_spec = pl.BlockSpec((tile_b, OUT_DIM), lambda i: (i, 0))
    # Constant index_map -> weight/bias tiles stay VMEM-resident; their DMAs
    # are elided after the first grid step.
    const = lambda shape: pl.BlockSpec(shape, lambda i: (0, 0))

    wbytes = jnp.dtype(dot_dtype).itemsize
    cost = pl.CostEstimate(
        flops=2 * b_eff * (IN_DIM * H1 + H1 * H2 + H2 * OUT_DIM),
        transcendentals=0,
        bytes_accessed=(b_eff * IN_DIM * 4 + b_eff * OUT_DIM * 4
                        + (IN_DIM * H1 + H1 * H2 + H2 * OUT_DIM) * wbytes
                        + (H1 + H2 + OUT_DIM) * 4),
    )

    out = pl.pallas_call(
        _mlp_kernel,
        out_shape=jax.ShapeDtypeStruct((b_eff, OUT_DIM), jnp.float32),
        grid=grid,
        in_specs=[
            x_spec,                      # xl  (tile_b, 20) f32
            x_spec,                      # xr  (tile_b, 20) f32
            const((IN_DIM, H1)),         # W1  (40, 128)    dot_dtype
            const((1, H1)),              # b1  f32
            const((H1, H2)),             # W2  (128, 64)    dot_dtype
            const((1, H2)),              # b2  f32
            const((H2, OUT_DIM)),        # W3  (64, 6)      dot_dtype
            const((1, OUT_DIM)),         # b3  f32
        ],
        out_specs=out_spec,
        compiler_params=pltpu.CompilerParams(
            dimension_semantics=("parallel",),   # megacore split on v7x
            vmem_limit_bytes=32 * 1024 * 1024),
        cost_estimate=cost,
    )(xl, xr, w1c, b1, w2c, b2, w3c, b3)

    return out[:b].reshape(b, N_WAYPOINTS, 2)


def init_params(key):
    """Deterministic synthetic parameters with PyTorch nn.Linear fan-in init
    (stored transposed: (in, out))."""
    ks = jax.random.split(key, 6)

    def lin(kw, kb, fan_in, fan_out):
        bound = 1.0 / jnp.sqrt(fan_in)
        w = jax.random.uniform(kw, (fan_in, fan_out), jnp.float32, -bound, bound)
        b = jax.random.uniform(kb, (1, fan_out), jnp.float32, -bound, bound)
        return w, b

    w1, b1 = lin(ks[0], ks[1], IN_DIM, H1)
    w2, b2 = lin(ks[2], ks[3], H1, H2)
    w3, b3 = lin(ks[4], ks[5], H2, OUT_DIM)
    return (w1, b1, w2, b2, w3, b3)


def reference_forward(track_left, track_right, params):
    """Plain-JAX reference mirroring the PyTorch module."""
    b = track_left.shape[0]
    x = jnp.concatenate([track_left, track_right], axis=1).reshape(b, IN_DIM)
    w1, b1, w2, b2, w3, b3 = params
    x = jnp.maximum(x @ w1 + b1, 0.0)
    x = jnp.maximum(x @ w2 + b2, 0.0)
    x = x @ w3 + b3
    return x.reshape(b, N_WAYPOINTS, 2)


if __name__ == "__main__":
    key = jax.random.PRNGKey(0)
    kp, kl, kr = jax.random.split(key, 3)

    params = init_params(kp)

    batch = 4  # small test batch; padded to one 8-row sublane group
    track_left = jax.random.normal(kl, (batch, N_TRACK, 2), jnp.float32)
    track_right = jax.random.normal(kr, (batch, N_TRACK, 2), jnp.float32)

    ref = reference_forward(track_left, track_right, params)

    # f32 MXU-operand path (tight tolerance vs. reference).
    out_f32 = mlp_planner_forward(track_left, track_right, params,
                                  dot_dtype=jnp.float32)
    out_f32 = jax.block_until_ready(out_f32)
    assert out_f32.shape == (batch, N_WAYPOINTS, 2), out_f32.shape
    assert jnp.allclose(out_f32, ref, atol=1e-4, rtol=1e-4), "f32 mismatch"

    # Default bf16 dot-operand path: inputs AND hidden activations are rounded
    # to bf16 before each matmul; accumulation stays f32.
    out_bf16 = mlp_planner_forward(track_left, track_right, params)
    out_bf16 = jax.block_until_ready(out_bf16)
    assert out_bf16.shape == (batch, N_WAYPOINTS, 2), out_bf16.shape
    assert jnp.allclose(out_bf16, ref, atol=5e-2, rtol=5e-2), "bf16 mismatch"

    print("KERNEL_OK")
</pallas_src>

<mosaic_0001>
module attributes {stable_mosaic.version = 11 : i64} {
  func.func @_mlp_kernel(%arg0: i32, %arg1: memref<8x20xf32, #tpu.memory_space<vmem>>, %arg2: memref<8x20xf32, #tpu.memory_space<vmem>>, %arg3: memref<40x128xf32, #tpu.memory_space<vmem>>, %arg4: memref<1x128xf32, #tpu.memory_space<vmem>>, %arg5: memref<128x64xf32, #tpu.memory_space<vmem>>, %arg6: memref<1x64xf32, #tpu.memory_space<vmem>>, %arg7: memref<64x6xf32, #tpu.memory_space<vmem>>, %arg8: memref<1x6xf32, #tpu.memory_space<vmem>>, %arg9: memref<8x6xf32, #tpu.memory_space<vmem>>) attributes {dimension_semantics = [#tpu.dimension_semantics<parallel>], iteration_bounds = array<i64: 1>, scalar_prefetch = 0 : i64, scratch_operands = 0 : i64, tpu.core_type = #tpu.core_type<tc>, window_params = [{transform_indices = @transform_0, window_bounds = array<i64: 8, 20>}, {transform_indices = @transform_1, window_bounds = array<i64: 8, 20>}, {pipeline_mode = #tpu.pipeline_mode<synchronous>, transform_indices = @transform_2, window_bounds = array<i64: 40, 128>}, {pipeline_mode = #tpu.pipeline_mode<synchronous>, transform_indices = @transform_3, window_bounds = array<i64: 1, 128>}, {pipeline_mode = #tpu.pipeline_mode<synchronous>, transform_indices = @transform_4, window_bounds = array<i64: 128, 64>}, {pipeline_mode = #tpu.pipeline_mode<synchronous>, transform_indices = @transform_5, window_bounds = array<i64: 1, 64>}, {pipeline_mode = #tpu.pipeline_mode<synchronous>, transform_indices = @transform_6, window_bounds = array<i64: 64, 6>}, {pipeline_mode = #tpu.pipeline_mode<synchronous>, transform_indices = @transform_7, window_bounds = array<i64: 1, 6>}, {transform_indices = @transform_8, window_bounds = array<i64: 8, 6>}]} {
    %c0 = arith.constant 0 : index
    %c0_0 = arith.constant 0 : index
    %0 = vector.load %arg1[%c0, %c0_0] : memref<8x20xf32, #tpu.memory_space<vmem>>, vector<8x20xf32>
    %c0_1 = arith.constant 0 : index
    %c0_2 = arith.constant 0 : index
    %1 = vector.load %arg2[%c0_1, %c0_2] : memref<8x20xf32, #tpu.memory_space<vmem>>, vector<8x20xf32>
    %2 = tpu.concatenate %0, %1 in 1 : vector<8x20xf32>, vector<8x20xf32> -> vector<8x40xf32>
    %c0_3 = arith.constant 0 : index
    %c0_4 = arith.constant 0 : index
    %3 = vector.load %arg3[%c0_3, %c0_4] : memref<40x128xf32, #tpu.memory_space<vmem>>, vector<40x128xf32>
    %cst = arith.constant dense<0.000000e+00> : vector<8x128xf32>
    %4 = tpu.matmul %2, %3, %cst {dimension_numbers = #tpu.dot_dimension_numbers<[1], [0], [0], [1], [0, 0, 1, 1], [], []>} : vector<8x40xf32>, vector<40x128xf32>, vector<8x128xf32> -> vector<8x128xf32>
    %c0_5 = arith.constant 0 : index
    %c0_6 = arith.constant 0 : index
    %5 = vector.load %arg4[%c0_5, %c0_6] : memref<1x128xf32, #tpu.memory_space<vmem>>, vector<1x128xf32>
    %6 = vector.broadcast %5 : vector<1x128xf32> to vector<8x128xf32>
    %7 = arith.addf %4, %6 : vector<8x128xf32>
    %cst_7 = arith.constant 0.000000e+00 : f32
    %8 = vector.broadcast %cst_7 : f32 to vector<8x128xf32>
    %9 = arith.maximumf %7, %8 : vector<8x128xf32>
    %c0_8 = arith.constant 0 : index
    %c0_9 = arith.constant 0 : index
    %10 = vector.load %arg5[%c0_8, %c0_9] : memref<128x64xf32, #tpu.memory_space<vmem>>, vector<128x64xf32>
    %cst_10 = arith.constant dense<0.000000e+00> : vector<8x64xf32>
    %11 = tpu.matmul %9, %10, %cst_10 {dimension_numbers = #tpu.dot_dimension_numbers<[1], [0], [0], [1], [0, 0, 1, 1], [], []>} : vector<8x128xf32>, vector<128x64xf32>, vector<8x64xf32> -> vector<8x64xf32>
    %c0_11 = arith.constant 0 : index
    %c0_12 = arith.constant 0 : index
    %12 = vector.load %arg6[%c0_11, %c0_12] : memref<1x64xf32, #tpu.memory_space<vmem>>, vector<1x64xf32>
    %13 = vector.broadcast %12 : vector<1x64xf32> to vector<8x64xf32>
    %14 = arith.addf %11, %13 : vector<8x64xf32>
    %cst_13 = arith.constant 0.000000e+00 : f32
    %15 = vector.broadcast %cst_13 : f32 to vector<8x64xf32>
    %16 = arith.maximumf %14, %15 : vector<8x64xf32>
    %c0_14 = arith.constant 0 : index
    %c0_15 = arith.constant 0 : index
    %17 = vector.load %arg7[%c0_14, %c0_15] : memref<64x6xf32, #tpu.memory_space<vmem>>, vector<64x6xf32>
    %cst_16 = arith.constant dense<0.000000e+00> : vector<8x6xf32>
    %18 = tpu.matmul %16, %17, %cst_16 {dimension_numbers = #tpu.dot_dimension_numbers<[1], [0], [0], [1], [0, 0, 1, 1], [], []>} : vector<8x64xf32>, vector<64x6xf32>, vector<8x6xf32> -> vector<8x6xf32>
    %c0_17 = arith.constant 0 : index
    %c0_18 = arith.constant 0 : index
    %19 = vector.load %arg8[%c0_17, %c0_18] : memref<1x6xf32, #tpu.memory_space<vmem>>, vector<1x6xf32>
    %20 = vector.broadcast %19 : vector<1x6xf32> to vector<8x6xf32>
    %21 = arith.addf %18, %20 : vector<8x6xf32>
    %c0_19 = arith.constant 0 : index
    %c0_20 = arith.constant 0 : index
    %22 = vector.load %arg9[%c0_19, %c0_20] : memref<8x6xf32, #tpu.memory_space<vmem>>, vector<8x6xf32>
    tpu.vector_store %arg9[%c0_19, %c0_20], %21 {strides = array<i32>} : memref<8x6xf32, #tpu.memory_space<vmem>>, vector<8x6xf32>,
    return
  }
  func.func @transform_0(%arg0: i32) -> (i32, i32) {
    %c0_i32 = arith.constant 0 : i32
    %c0_i32_0 = arith.constant 0 : i32
    return %arg0, %c0_i32 : i32, i32
  }
  func.func @transform_1(%arg0: i32) -> (i32, i32) {
    %c0_i32 = arith.constant 0 : i32
    %c0_i32_0 = arith.constant 0 : i32
    return %arg0, %c0_i32 : i32, i32
  }
  func.func @transform_2(%arg0: i32) -> (i32, i32) {
    %c0_i32 = arith.constant 0 : i32
    %c0_i32_0 = arith.constant 0 : i32
    %c0_i32_1 = arith.constant 0 : i32
    return %c0_i32, %c0_i32_0 : i32, i32
  }
  func.func @transform_3(%arg0: i32) -> (i32, i32) {
    %c0_i32 = arith.constant 0 : i32
    %c0_i32_0 = arith.constant 0 : i32
    %c0_i32_1 = arith.constant 0 : i32
    return %c0_i32, %c0_i32_0 : i32, i32
  }
  func.func @transform_4(%arg0: i32) -> (i32, i32) {
    %c0_i32 = arith.constant 0 : i32
    %c0_i32_0 = arith.constant 0 : i32
    %c0_i32_1 = arith.constant 0 : i32
    return %c0_i32, %c0_i32_0 : i32, i32
  }
  func.func @transform_5(%arg0: i32) -> (i32, i32) {
    %c0_i32 = arith.constant 0 : i32
    %c0_i32_0 = arith.constant 0 : i32
    %c0_i32_1 = arith.constant 0 : i32
    return %c0_i32, %c0_i32_0 : i32, i32
  }
  func.func @transform_6(%arg0: i32) -> (i32, i32) {
    %c0_i32 = arith.constant 0 : i32
    %c0_i32_0 = arith.constant 0 : i32
    %c0_i32_1 = arith.constant 0 : i32
    return %c0_i32, %c0_i32_0 : i32, i32
  }
  func.func @transform_7(%arg0: i32) -> (i32, i32) {
    %c0_i32 = arith.constant 0 : i32
    %c0_i32_0 = arith.constant 0 : i32
    %c0_i32_1 = arith.constant 0 : i32
    return %c0_i32, %c0_i32_0 : i32, i32
  }
  func.func @transform_8(%arg0: i32) -> (i32, i32) {
    %c0_i32 = arith.constant 0 : i32
    %c0_i32_0 = arith.constant 0 : i32
    return %arg0, %c0_i32 : i32, i32
  }
}

</mosaic_0001>

<llo_original>
// kernel: tpu_custom_call.1
$region0: #{tpu_custom_call.1}
  #allocation0 [shape = 'u32[]', space=smem, size = 0x4, offset = 0x4, fixed_abs, tag = 'smem constant byte address 0x4 - core index']
  #allocation1 [shape = 'u32[72,128]{1,0:T(1,128)}', space=vmem, size = 0x9000, scoped, tag = 'internal scratch']
  %s0 = inlined_call_operand.vmem [shape: f32[8,20], index: 0, kind: input, shape index: {}]
  %s1 = inlined_call_operand.vmem [shape: f32[8,20], index: 1, kind: input, shape index: {}]
  %s2 = inlined_call_operand.vmem [shape: f32[40,128], index: 2, kind: input, shape index: {}]
  %s3 = inlined_call_operand.vmem [shape: f32[1,128], index: 3, kind: input, shape index: {}]
  %s4 = inlined_call_operand.vmem [shape: f32[128,64], index: 4, kind: input, shape index: {}]
  %s5 = inlined_call_operand.vmem [shape: f32[1,64], index: 5, kind: input, shape index: {}]
  %s6 = inlined_call_operand.vmem [shape: f32[64,6], index: 6, kind: input, shape index: {}]
  %s7 = inlined_call_operand.vmem [shape: f32[1,6], index: 7, kind: input, shape index: {}]
  %s8 = inlined_call_operand.hbm [shape: f32[8,6], index: 8, kind: output, shape index: {}]
  %s9 = sld [smem:[#allocation0]]
  $region42: #{tpu_custom_call.1} parent=0
    _
  %s11 = ssub.s32 1, %s9
  %s12 = scalar_select 0, %s11, %s9
  $region1: #{tpu_custom_call.1} parent=0
    #allocation2 [shape = 'u8[4096]{0}', space=vmem, size = 0x1000, scoped, tag = 'output window, operand 0, single buffered']
    #allocation3 [shape = 's32[1]{0}', space=sflag, size = 0x4, scoped, tag = 'scoped memory for tpu_custom_call.1']
    %13 = vsyncpa [#allocation3], 0
    // Predicated region
    $region2: #{tpu_custom_call.1} parent=1 // pred_check
      _
    $region3: #{tpu_custom_call.1} parent=1 // pred_check_branch
      %15 = sbr.rel (0) target = $region5
    $region4: #{tpu_custom_call.1} parent=1 // pred_region
      _
    $region5: #{tpu_custom_call.1} parent=1 // pred_fallthru
      _
    // Predicated region
    $region6: #{tpu_custom_call.1} parent=1 // pred_check
      _
    $region7: #{tpu_custom_call.1} parent=1 // pred_check_branch
      %17 = sbr.rel (0) target = $region9
    $region8: #{tpu_custom_call.1} parent=1 // pred_region
      _
    $region9: #{tpu_custom_call.1} parent=1 // pred_fallthru
      _
    // Predicated region
    $region10: #{tpu_custom_call.1} parent=1 // pred_check
      _
    $region11: #{tpu_custom_call.1} parent=1 // pred_check_branch
      %19 = sbr.rel (0) target = $region13
    $region12: #{tpu_custom_call.1} parent=1 // pred_region
      _
    $region13: #{tpu_custom_call.1} parent=1 // pred_fallthru
      _
    // Predicated region
    $region14: #{tpu_custom_call.1} parent=1 // pred_check
      _
    $region15: #{tpu_custom_call.1} parent=1 // pred_check_branch
      %21 = sbr.rel (0) target = $region17
    $region16: #{tpu_custom_call.1} parent=1 // pred_region
      _
    $region17: #{tpu_custom_call.1} parent=1 // pred_fallthru
      _
    // Predicated region
    $region18: #{tpu_custom_call.1} parent=1 // pred_check
      _
    $region19: #{tpu_custom_call.1} parent=1 // pred_check_branch
      %23 = sbr.rel (0) target = $region21
    $region20: #{tpu_custom_call.1} parent=1 // pred_region
      _
    $region21: #{tpu_custom_call.1} parent=1 // pred_fallthru
      _
    // Predicated region
    $region22: #{tpu_custom_call.1} parent=1 // pred_check
      _
    $region23: #{tpu_custom_call.1} parent=1 // pred_check_branch
      %25 = sbr.rel (0) target = $region25
    $region24: #{tpu_custom_call.1} parent=1 // pred_region
      _
    $region25: #{tpu_custom_call.1} parent=1 // pred_fallthru
      _
    // Predicated region
    $region26: #{tpu_custom_call.1} parent=1 // pred_check
      _
    $region27: #{tpu_custom_call.1} parent=1 // pred_check_branch
      %27 = sbr.rel (0) target = $region29
    $region28: #{tpu_custom_call.1} parent=1 // pred_region
      _
    $region29: #{tpu_custom_call.1} parent=1 // pred_fallthru
      _
    // Predicated region
    $region30: #{tpu_custom_call.1} parent=1 // pred_check
      _
    $region31: #{tpu_custom_call.1} parent=1 // pred_check_branch
      %29 = sbr.rel (0) target = $region33
    $region32: #{tpu_custom_call.1} parent=1 // pred_region
      _
    $region33: #{tpu_custom_call.1} parent=1 // pred_fallthru
      _
    %v30 = vld [vmem:[%s0] sm:$0xff]
    %v31 = vld [vmem:[%s1] sm:$0xff]
    %33 = vrot.lane.b32.xlu0 %v31, 20
    %v34 = vpop.permute.xlu0 %33
    %vm36 = vcmask 162816
    %v37 = vsel %vm36, %v30, %v34
    %v38 = vld [vmem:[%s2] sm:$0xff]
    %v39 = vld [vmem:[%s2 + $0x8] sm:$0xff]
    %v40 = vld [vmem:[%s2 + $0x10] sm:$0xff]
    %v41 = vld [vmem:[%s2 + $0x18] sm:$0xff]
    %v42 = vld [vmem:[%s2 + $0x20] sm:$0xff]
    %v43 = vld [vmem:[%s3] sm:$0x1]
    %v45 = vperm.slane %v43, 0
    %vm47 = vcmask 326656
    %v49 = vsel %vm47, %v37, 0
    %51 = vmatpush.msra.mxu0 0.0
    %52 = vmatpush.msra.mxu0 0.0
    %53 = vmatpush.msra.mxu0 0.0
    %54 = vmatpush.msra.mxu0 0.0
    %55 = vmatpush.msra.mxu0 0.0
    %56 = vmatpush.msra.mxu0 0.0
    %57 = vmatpush.msra.mxu0 0.0
    %58 = vmatpush.msra.mxu0 0.0
    %59 = vmatpush.msra.mxu0 0.0
    %60 = vmatpush.msra.mxu0 0.0
    %61 = vmatpush.msra.mxu0 0.0
    %62 = vmatpush.msra.mxu0 %v42
    %63 = vmatpush.msra.mxu0 %v41
    %64 = vmatpush.msra.mxu0 %v40
    %65 = vmatpush.msra.mxu0 %v39
    %66 = vmatpush.msra.mxu0 %v38
    %67 = vmatmul.f32.gmra.mxu0 %v49
    %v68 = vpop.f32.mrf.mxu0
    %v69 = vadd.f32 %v45, %v68
    %70 = vdwg.mxu0
    %v71 = vmax.f32 %v69, 0.0
    %v72 = vld [vmem:[%s4] sm:$0xff]
    %v73 = vld [vmem:[%s4 + $0x8] sm:$0xff]
    %v74 = vld [vmem:[%s4 + $0x10] sm:$0xff]
    %v75 = vld [vmem:[%s4 + $0x18] sm:$0xff]
    %v76 = vld [vmem:[%s4 + $0x20] sm:$0xff]
    %v77 = vld [vmem:[%s4 + $0x28] sm:$0xff]
    %v78 = vld [vmem:[%s4 + $0x30] sm:$0xff]
    %v79 = vld [vmem:[%s4 + $0x38] sm:$0xff]
    %v80 = vld [vmem:[%s4 + $0x40] sm:$0xff]
    %v81 = vld [vmem:[%s4 + $0x48] sm:$0xff]
    %v82 = vld [vmem:[%s4 + $0x50] sm:$0xff]
    %v83 = vld [vmem:[%s4 + $0x58] sm:$0xff]
    %v84 = vld [vmem:[%s4 + $0x60] sm:$0xff]
    %v85 = vld [vmem:[%s4 + $0x68] sm:$0xff]
    %v86 = vld [vmem:[%s4 + $0x70] sm:$0xff]
    %v87 = vld [vmem:[%s4 + $0x78] sm:$0xff]
    %v88 = vld [vmem:[%s5] sm:$0x1]
    %v90 = vperm.slane %v88, 0
    %92 = vmatpush.msra.mxu0 %v87
    %93 = vmatpush.msra.mxu0 %v86
    %94 = vmatpush.msra.mxu0 %v85
    %95 = vmatpush.msra.mxu0 %v84
    %96 = vmatpush.msra.mxu0 %v83
    %97 = vmatpush.msra.mxu0 %v82
    %98 = vmatpush.msra.mxu0 %v81
    %99 = vmatpush.msra.mxu0 %v80
    %100 = vmatpush.msra.mxu0 %v79
    %101 = vmatpush.msra.mxu0 %v78
    %102 = vmatpush.msra.mxu0 %v77
    %103 = vmatpush.msra.mxu0 %v76
    %104 = vmatpush.msra.mxu0 %v75
    %105 = vmatpush.msra.mxu0 %v74
    %106 = vmatpush.msra.mxu0 %v73
    %107 = vmatpush.msra.mxu0 %v72
    %108 = vmatmul.f32.gmra.mxu0 %v71
    %v109 = vpop.f32.mrf.mxu0
    %v110 = vadd.f32 %v90, %v109
    %111 = vdwg.mxu0
    %v112 = vmax.f32 %v110, 0.0
    %v113 = vld [vmem:[%s6] sm:$0xff]
    %v114 = vld [vmem:[%s6 + $0x8] sm:$0xff]
    %v115 = vld [vmem:[%s6 + $0x10] sm:$0xff]
    %v116 = vld [vmem:[%s6 + $0x18] sm:$0xff]
    %v117 = vld [vmem:[%s6 + $0x20] sm:$0xff]
    %v118 = vld [vmem:[%s6 + $0x28] sm:$0xff]
    %v119 = vld [vmem:[%s6 + $0x30] sm:$0xff]
    %v120 = vld [vmem:[%s6 + $0x38] sm:$0xff]
    %v121 = vld [vmem:[%s7] sm:$0x1]
    %v123 = vperm.slane %v121, 0
    %vm125 = vcmask 523264
    %v127 = vsel %vm125, %v112, 0
    %129 = vmatpush.msra.mxu0 0.0
    %130 = vmatpush.msra.mxu0 0.0
    %131 = vmatpush.msra.mxu0 0.0
    %132 = vmatpush.msra.mxu0 0.0
    %133 = vmatpush.msra.mxu0 0.0
    %134 = vmatpush.msra.mxu0 0.0
    %135 = vmatpush.msra.mxu0 0.0
    %136 = vmatpush.msra.mxu0 0.0
    %137 = vmatpush.msra.mxu0 %v120
    %138 = vmatpush.msra.mxu0 %v119
    %139 = vmatpush.msra.mxu0 %v118
    %140 = vmatpush.msra.mxu0 %v117
    %141 = vmatpush.msra.mxu0 %v116
    %142 = vmatpush.msra.mxu0 %v115
    %143 = vmatpush.msra.mxu0 %v114
    %144 = vmatpush.msra.mxu0 %v113
    %145 = vmatmul.f32.gmra.mxu0 %v127
    %v146 = vpop.f32.mrf.mxu0
    %v147 = vadd.f32 %v123, %v146
    %148 = vdwg.mxu0
    %vm149 = vcmask 48128
    %150 = vst.msk [vmem:[#allocation2] sm:$0xff] %vm149, %v147
    // Predicated region
    $region34: #{tpu_custom_call.1} parent=1 // pred_check
      _
    $region35: #{tpu_custom_call.1} parent=1 // pred_check_branch
      %152 = sbr.rel (0) target = $region37
    $region36: #{tpu_custom_call.1} parent=1 // pred_region
      %154 = vsyncadd [#allocation3], 0
      %s156 = sshll.u32 [#allocation2], 4
      %s157 = int_to_ptr.vmem [resolvable:$true] %s156
      %s158 = sshll.u32 %s8, 4
      %s159 = int_to_ptr.hbm [resolvable:$true] %s158
      %161 = dma.vmem_to_hbm [thread:$0]  %s157, 128, %s159, [#allocation3]
    $region37: #{tpu_custom_call.1} parent=1 // pred_fallthru
      _
    // Predicated region
    $region38: #{tpu_custom_call.1} parent=1 // pred_check
      _
    $region39: #{tpu_custom_call.1} parent=1 // pred_check_branch
      %163 = sbr.rel (0) target = $region41
    $region40: #{tpu_custom_call.1} parent=1 // pred_region
      %165 = dma.done [#allocation3], 128
    $region41: #{tpu_custom_call.1} parent=1 // pred_fallthru
      _
    %166 = vsyncpa [#allocation3], 1

</llo_original>
